<compile_context>
chip_gen: v7x
topology: tpu7x:2x2x1
jax: 0.10.0
libtpu: 0.0.40
codegen_flags: <defaults>
</compile_context>

<pallas_src>
import functools

import jax
import jax.numpy as jnp
from jax.experimental import pallas as pl
from jax.experimental.pallas import tpu as pltpu


def _amp_scale_kernel(x_ref, u_ref, o_ref, *, amplitude_scale):
    # x_ref: (tile_b, tile_n) input tile
    # u_ref: (tile_b, 1)      per-row uniform draw, follows the row tile
    # o_ref: (tile_b, tile_n) output tile
    #
    # Scale is computed in f32 on the VPU; this kernel is HBM-bound, so the
    # extra multiply/add is free.
    scale = u_ref[...].astype(jnp.float32) * amplitude_scale + 1.0
    o_ref[...] = (x_ref[...].astype(jnp.float32) * scale).astype(o_ref.dtype)


def _pick_tile(dim, target, quantum):
    """Largest legal block extent <= `target` for an axis of size `dim`.

    Returns `dim` itself (full-extent block: always legal) when the axis is
    smaller than the target or not a multiple of `quantum`; otherwise the
    largest multiple of `quantum` that divides `dim` and is <= target.
    """
    if dim <= target or dim % quantum != 0:
        return dim
    t = (target // quantum) * quantum
    while dim % t != 0:
        t -= quantum
    return t


def amplitude_scale_forward(loc_inputs, u, amplitude_scale, *, tile_b=256, tile_n=2048):
    """loc_inputs: (B, N); u: (B, 1) f32 uniform in [0,1)  ->  (B, N).

    Defaults (tile_b=256, tile_n=2048) give ~2 MiB f32 blocks: large enough to
    sit near the HBM roofline (lane-dense, unmasked stores), small enough that
    the double-buffered working set (< ~16 MiB) fits comfortably in v7x's
    64 MiB VMEM as well as v5e/v6e's 128 MiB.
    """
    B, N = loc_inputs.shape
    tb = _pick_tile(B, tile_b, 8)      # multiple of 8 sublanes (or full extent)
    tn = _pick_tile(N, tile_n, 128)    # multiple of 128 lanes (or full extent)
    grid = (B // tb, N // tn)

    block_bytes = tb * tn * jnp.dtype(loc_inputs.dtype).itemsize
    # in + out blocks, double-buffered, plus headroom; clamp to v7x-safe range.
    vmem_limit = int(min(64 << 20, max(16 << 20, 8 * block_bytes)))

    kernel = functools.partial(_amp_scale_kernel, amplitude_scale=float(amplitude_scale))
    return pl.pallas_call(
        kernel,
        out_shape=jax.ShapeDtypeStruct((B, N), loc_inputs.dtype),
        grid_spec=pltpu.PrefetchScalarGridSpec(
            num_scalar_prefetch=0,
            grid=grid,
            in_specs=[
                pl.BlockSpec((tb, tn), lambda i, j: (i, j)),
                pl.BlockSpec((tb, 1), lambda i, j: (i, 0)),
            ],
            out_specs=pl.BlockSpec((tb, tn), lambda i, j: (i, j)),
        ),
        compiler_params=pltpu.CompilerParams(
            dimension_semantics=("parallel", "parallel"),
            vmem_limit_bytes=vmem_limit,
        ),
    )(loc_inputs, u)


class AmplitudeScale:
    """JAX/Pallas port of the PyTorch AmplitudeScale augmentation module."""

    def __init__(self, amplitude_scale=0.5, *, min_pallas_elements=0):
        self.amplitude_scale = amplitude_scale
        # For tiny inputs the fixed pallas_call/grid overhead dwarfs the work;
        # callers may set a threshold to fall back to plain XLA (the real win
        # at scale is fusing this multiply into the producer/consumer kernel).
        self.min_pallas_elements = min_pallas_elements

    def __call__(self, loc_inputs, key):
        batch_size = loc_inputs.shape[0]
        # torch.rand -> uniform [0, 1); computed in f32 for scale precision.
        u = jax.random.uniform(key, (batch_size, 1), dtype=jnp.float32)
        if loc_inputs.size < self.min_pallas_elements:
            scale = (u * self.amplitude_scale + 1.0).astype(loc_inputs.dtype)
            return loc_inputs * scale
        return amplitude_scale_forward(loc_inputs, u, self.amplitude_scale)


def _reference(x, u, amplitude_scale):
    scale = u.astype(jnp.float32) * amplitude_scale + 1.0
    return (x.astype(jnp.float32) * scale).astype(x.dtype)


if __name__ == "__main__":
    key = jax.random.PRNGKey(0)
    k_x, k_scale, k_x2, k_s2 = jax.random.split(key, 4)

    # --- Check 1: module-consistent tiny shape (B=2, N=256) -> full-extent blocks.
    B, N = 2, 256
    x = jax.random.normal(k_x, (B, N), dtype=jnp.float32)
    module = AmplitudeScale(amplitude_scale=0.5)
    out = jax.block_until_ready(module(x, k_scale))

    u = jax.random.uniform(k_scale, (B, 1), dtype=jnp.float32)
    ref = _reference(x, u, 0.5)
    assert out.shape == (B, N) and out.dtype == jnp.float32
    assert jnp.allclose(out, ref, atol=1e-6, rtol=1e-6)

    # --- Check 2: exercise the 2-D tiled path (row tile follows the scale block).
    B2, N2 = 16, 512
    x2 = jax.random.normal(k_x2, (B2, N2), dtype=jnp.float32)
    u2 = jax.random.uniform(k_s2, (B2, 1), dtype=jnp.float32)
    out2 = jax.block_until_ready(
        amplitude_scale_forward(x2, u2, 0.5, tile_b=8, tile_n=256)  # grid = (2, 2)
    )
    ref2 = _reference(x2, u2, 0.5)
    assert out2.shape == (B2, N2)
    assert jnp.allclose(out2, ref2, atol=1e-6, rtol=1e-6)

    print("KERNEL_OK")
</pallas_src>

<mosaic_0001>
module attributes {stable_mosaic.version = 11 : i64} {
  func.func @_amp_scale_kernel(%arg0: i32, %arg1: i32, %arg2: memref<2x256xf32, #tpu.memory_space<vmem>>, %arg3: memref<2x1xf32, #tpu.memory_space<vmem>>, %arg4: memref<2x256xf32, #tpu.memory_space<vmem>>) attributes {dimension_semantics = [#tpu.dimension_semantics<parallel>, #tpu.dimension_semantics<parallel>], iteration_bounds = array<i64: 1, 1>, scalar_prefetch = 0 : i64, scratch_operands = 0 : i64, tpu.core_type = #tpu.core_type<tc>, window_params = [{transform_indices = @transform_0, window_bounds = array<i64: 2, 256>}, {transform_indices = @transform_1, window_bounds = array<i64: 2, 1>}, {transform_indices = @transform_2, window_bounds = array<i64: 2, 256>}]} {
    %c0 = arith.constant 0 : index
    %c0_0 = arith.constant 0 : index
    %0 = vector.load %arg3[%c0, %c0_0] : memref<2x1xf32, #tpu.memory_space<vmem>>, vector<2x1xf32>
    %cst = arith.constant 5.000000e-01 : f32
    %1 = vector.broadcast %cst : f32 to vector<2x1xf32>
    %2 = arith.mulf %0, %1 : vector<2x1xf32>
    %cst_1 = arith.constant 1.000000e+00 : f32
    %3 = vector.broadcast %cst_1 : f32 to vector<2x1xf32>
    %4 = arith.addf %2, %3 : vector<2x1xf32>
    %c0_2 = arith.constant 0 : index
    %c0_3 = arith.constant 0 : index
    %5 = vector.load %arg2[%c0_2, %c0_3] : memref<2x256xf32, #tpu.memory_space<vmem>>, vector<2x256xf32>
    %6 = vector.broadcast %4 : vector<2x1xf32> to vector<2x256xf32>
    %7 = arith.mulf %5, %6 : vector<2x256xf32>
    %c0_4 = arith.constant 0 : index
    %c0_5 = arith.constant 0 : index
    %8 = vector.load %arg4[%c0_4, %c0_5] : memref<2x256xf32, #tpu.memory_space<vmem>>, vector<2x256xf32>
    tpu.vector_store %arg4[%c0_4, %c0_5], %7 {strides = array<i32>} : memref<2x256xf32, #tpu.memory_space<vmem>>, vector<2x256xf32>,
    return
  }
  func.func @transform_0(%arg0: i32, %arg1: i32) -> (i32, i32) {
    %c0_i32 = arith.constant 0 : i32
    return %arg0, %arg1 : i32, i32
  }
  func.func @transform_1(%arg0: i32, %arg1: i32) -> (i32, i32) {
    %c0_i32 = arith.constant 0 : i32
    %c0_i32_0 = arith.constant 0 : i32
    return %arg0, %c0_i32 : i32, i32
  }
  func.func @transform_2(%arg0: i32, %arg1: i32) -> (i32, i32) {
    %c0_i32 = arith.constant 0 : i32
    return %arg0, %arg1 : i32, i32
  }
}

</mosaic_0001>

<llo_original>
// kernel: tpu_custom_call.1
$region0: #{tpu_custom_call.1}
  #allocation0 [shape = 'u32[]', space=smem, size = 0x4, offset = 0x4, fixed_abs, tag = 'smem constant byte address 0x4 - core index']
  #allocation1 [shape = 'u32[144,128]{1,0:T(1,128)}', space=vmem, size = 0x12000, scoped, tag = 'internal scratch']
  %s0 = inlined_call_operand.hbm [shape: f32[2,256], index: 0, kind: input, shape index: {}]
  %s1 = inlined_call_operand.vmem [shape: f32[2,1], index: 1, kind: input, shape index: {}]
  %s2 = inlined_call_operand.hbm [shape: f32[2,256], index: 2, kind: output, shape index: {}]
  %s3 = sld [smem:[#allocation0]]
  $region22: #{tpu_custom_call.1} parent=0
    _
  %s5 = ssub.s32 1, %s3
  %s6 = scalar_select 0, %s5, %s3
  $region1: #{tpu_custom_call.1} parent=0
    #allocation2 [shape = 'u8[2048]{0}', space=vmem, size = 0x800, scoped, tag = 'input window, operand 0, single buffered']
    #allocation3 [shape = 's32[1]{0}', space=sflag, size = 0x4, scoped, tag = 'scoped memory for tpu_custom_call.1']
    #allocation4 [shape = 's32[1]{0}', space=sflag, size = 0x4, scoped, tag = 'scoped memory for tpu_custom_call.1']
    #allocation5 [shape = 'u8[2048]{0}', space=vmem, size = 0x800, scoped, tag = 'output window, operand 0, single buffered']
    %7 = vsyncpa [#allocation3], 0
    %8 = vsyncpa [#allocation4], 0
    // Predicated region
    $region2: #{tpu_custom_call.1} parent=1 // pred_check
      _
    $region3: #{tpu_custom_call.1} parent=1 // pred_check_branch
      %10 = sbr.rel (0) target = $region5
    $region4: #{tpu_custom_call.1} parent=1 // pred_region
      %s12 = ssub.s32 64, 64
      %13 = vsyncadd [#allocation3], %s12
      %s15 = sshll.u32 [#allocation2], 4
      %s16 = int_to_ptr.vmem [resolvable:$true] %s15
      %18 = dma.hbm_to_vmem [thread:$0]  %s0, 64, %s16, [#allocation3]
    $region5: #{tpu_custom_call.1} parent=1 // pred_fallthru
      _
    // Predicated region
    $region6: #{tpu_custom_call.1} parent=1 // pred_check
      _
    $region7: #{tpu_custom_call.1} parent=1 // pred_check_branch
      %20 = sbr.rel (0) target = $region9
    $region8: #{tpu_custom_call.1} parent=1 // pred_region
      _
    $region9: #{tpu_custom_call.1} parent=1 // pred_fallthru
      _
    // Predicated region
    $region10: #{tpu_custom_call.1} parent=1 // pred_check
      _
    $region11: #{tpu_custom_call.1} parent=1 // pred_check_branch
      %22 = sbr.rel (0) target = $region13
    $region12: #{tpu_custom_call.1} parent=1 // pred_region
      %23 = dma.done [#allocation3], 64
    $region13: #{tpu_custom_call.1} parent=1 // pred_fallthru
      _
    %v24 = vld [vmem:[%s1] sm:$0x3]
    %v25 = vmul.f32 %v24, 0.5
    %v26 = vadd.f32 %v25, 1.0
    %v27 = vld [vmem:[#allocation2] sm:$0xf]
    %29 = vset.pattern.permute.xlu0 0
    %30 = vperm.xlu0 %29, %v26
    %v31 = vpop.permute.xlu0 %30
    %v33 = vunpack.c.l.s4 269488144
    %v34 = vunpack.c.0.s8 %v33
    %v35 = vlaneseq
    %v36 = vshrl.u32 %v35, 7
    %v37 = vsub.s32 %v34, %v36
    %v38 = vrot.slane %v31, %v37
    %v40 = vmul.f32 %v27, %v38
    %41 = vst [vmem:[#allocation5] sm:$0xf] %v40
    // Predicated region
    $region14: #{tpu_custom_call.1} parent=1 // pred_check
      _
    $region15: #{tpu_custom_call.1} parent=1 // pred_check_branch
      %43 = sbr.rel (0) target = $region17
    $region16: #{tpu_custom_call.1} parent=1 // pred_region
      %s45 = ssub.s32 64, 64
      %46 = vsyncadd [#allocation4], %s45
      %s48 = sshll.u32 [#allocation5], 4
      %s49 = int_to_ptr.vmem [resolvable:$true] %s48
      %51 = dma.vmem_to_hbm [thread:$0]  %s49, 64, %s2, [#allocation4]
    $region17: #{tpu_custom_call.1} parent=1 // pred_fallthru
      _
    // Predicated region
    $region18: #{tpu_custom_call.1} parent=1 // pred_check
      _
    $region19: #{tpu_custom_call.1} parent=1 // pred_check_branch
      %53 = sbr.rel (0) target = $region21
    $region20: #{tpu_custom_call.1} parent=1 // pred_region
      %54 = dma.done [#allocation4], 64
    $region21: #{tpu_custom_call.1} parent=1 // pred_fallthru
      _
    %55 = vsyncpa [#allocation3], 1
    %56 = vsyncpa [#allocation4], 1

</llo_original>
